<compile_context>
chip_gen: v7x
topology: tpu7x:2x2x1
jax: 0.10.0
libtpu: 0.0.40
codegen_flags: <defaults>
</compile_context>

<pallas_src>
import functools

import jax
import jax.numpy as jnp
from jax import lax
from jax.experimental import pallas as pl
from jax.experimental.pallas import tpu as pltpu


def _round_up(x, m):
    return ((x + m - 1) // m) * m


def _fit_tile(dim, tile):
    """Whole dim if it fits in one tile, else the aligned tile size."""
    return dim if dim <= tile else tile


@functools.lru_cache(maxsize=1)
def _vmem_limit_bytes():
    # Re-derive the scoped VMEM budget per chip (v7x: 64 MiB physical,
    # v5e/v6e: 128 MiB) instead of relying on the 16/32 MiB defaults.
    try:
        cap = int(pltpu.get_tpu_info().vmem_capacity_bytes)
    except Exception:  # pragma: no cover - conservative fallback
        cap = 64 << 20
    return int(min(cap * 3 // 4, 100 << 20))


# --------------------------------------------------------------------------
# Pallas kernels
# --------------------------------------------------------------------------
def _linear_kernel(x_ref, w_ref, b_ref, o_ref, *, relu):
    xb = x_ref[...].astype(jnp.bfloat16)                     # cast once per tile
    y = jnp.dot(xb, w_ref[...], preferred_element_type=jnp.float32)
    y = y + b_ref[...]
    if relu:
        y = jnp.maximum(y, 0.0)
    o_ref[...] = y.astype(o_ref.dtype)


def pallas_linear(x, w, b, relu=False, tm=256):
    """y = x @ w + b (optional ReLU).  x:(M,K) f32, w:(K,N) bf16, b:(N,) f32."""
    M, K = x.shape
    N = w.shape[1]
    tm_ = _fit_tile(M, tm)
    return pl.pallas_call(
        functools.partial(_linear_kernel, relu=relu),
        out_shape=jax.ShapeDtypeStruct((M, N), jnp.float32),
        grid=(pl.cdiv(M, tm_),),
        in_specs=[
            pl.BlockSpec((tm_, K), lambda i: (i, 0)),
            pl.BlockSpec((K, N), lambda i: (0, 0)),
            pl.BlockSpec((1, N), lambda i: (0, 0)),
        ],
        out_specs=pl.BlockSpec((tm_, N), lambda i: (i, 0)),
        compiler_params=pltpu.CompilerParams(
            dimension_semantics=("parallel",),
            vmem_limit_bytes=_vmem_limit_bytes()),
        cost_estimate=pl.CostEstimate(
            flops=2 * M * K * N, transcendentals=0,
            bytes_accessed=4 * (M * K + M * N) + 2 * K * N),
    )(x, w, b.reshape(1, N))


# ---- LearnedTimeDiffusion (method='spectral'), tiled two-pass --------------
def _spec_tobasis_kernel(x_ref, mass_ref, ev_ref, coef_ref, spec_ref,
                         *, n_total, tn):
    i = pl.program_id(0)

    @pl.when(i == 0)
    def _():
        spec_ref[...] = jnp.zeros_like(spec_ref)

    mx = x_ref[...] * mass_ref[...]                           # (tn, C) f32
    if n_total % tn != 0:
        # mask padded rows of the ragged last tile so they add exactly zero
        valid = n_total - i * tn
        rows = lax.broadcasted_iota(jnp.int32, mx.shape, 0)
        mx = jnp.where(rows < valid, mx, 0.0)
    mxb = mx.astype(jnp.bfloat16)
    ev = ev_ref[...]                                          # (tn, K) bf16
    # spec += evecs^T @ (mass*x): contract over axis 0 of both (no transpose op)
    spec_ref[...] += lax.dot_general(ev, mxb, (((0,), (0,)), ((), ())),
                                     preferred_element_type=jnp.float32)

    @pl.when(i == pl.num_programs(0) - 1)
    def _():
        spec_ref[...] = spec_ref[...] * coef_ref[...]         # exp(-evals*t)


def _spec_frombasis_kernel(ev_ref, spec_ref, o_ref):
    spec_b = spec_ref[...].astype(jnp.bfloat16)               # (K, C)
    o_ref[...] = jnp.dot(ev_ref[...], spec_b,
                         preferred_element_type=jnp.float32)  # (tn, C)


def spectral_diffusion(x, mass, evecs_bf16, coef, tn=512):
    """x:(N,C) f32, mass:(N,) f32, evecs:(N,K) bf16, coef:(K,C) f32 precomputed."""
    N, C = x.shape
    K = evecs_bf16.shape[1]
    tn_ = _fit_tile(N, tn)
    vmem = _vmem_limit_bytes()

    # Pass 1: spec = coef * (evecs^T @ (mass*x)), accumulated over row tiles.
    spec = pl.pallas_call(
        functools.partial(_spec_tobasis_kernel, n_total=N, tn=tn_),
        out_shape=jax.ShapeDtypeStruct((K, C), jnp.float32),
        grid=(pl.cdiv(N, tn_),),
        in_specs=[
            pl.BlockSpec((tn_, C), lambda i: (i, 0)),   # x
            pl.BlockSpec((tn_, 1), lambda i: (i, 0)),   # mass
            pl.BlockSpec((tn_, K), lambda i: (i, 0)),   # evecs
            pl.BlockSpec((K, C), lambda i: (0, 0)),     # coef (resident)
        ],
        out_specs=pl.BlockSpec((K, C), lambda i: (0, 0)),     # resident accumulator
        compiler_params=pltpu.CompilerParams(
            dimension_semantics=("arbitrary",),
            vmem_limit_bytes=vmem),
        cost_estimate=pl.CostEstimate(
            flops=2 * N * K * C, transcendentals=0,
            bytes_accessed=4 * N * C + 2 * N * K + 4 * K * C),
    )(x, mass.reshape(N, 1), evecs_bf16, coef)

    # Pass 2: x_diff = evecs @ spec, row-tiled ("parallel" for v7x's 2 TCs).
    return pl.pallas_call(
        _spec_frombasis_kernel,
        out_shape=jax.ShapeDtypeStruct((N, C), jnp.float32),
        grid=(pl.cdiv(N, tn_),),
        in_specs=[
            pl.BlockSpec((tn_, K), lambda i: (i, 0)),   # evecs
            pl.BlockSpec((K, C), lambda i: (0, 0)),     # spec (resident)
        ],
        out_specs=pl.BlockSpec((tn_, C), lambda i: (i, 0)),
        compiler_params=pltpu.CompilerParams(
            dimension_semantics=("parallel",),
            vmem_limit_bytes=vmem),
        cost_estimate=pl.CostEstimate(
            flops=2 * N * K * C, transcendentals=0,
            bytes_accessed=2 * N * K + 4 * N * C + 4 * K * C),
    )(evecs_bf16, spec)


# ---- Fused DiffusionNet block tail (k-tiled dense gradient contraction) ----
def _block_tail_kernel(x_ref, xd_ref, xdk_ref, gX_ref, gY_ref,
                       acat_ref, w0_ref, b0_ref, w1_ref, b1_ref,
                       o_ref, gx_acc, gy_acc, *, n_total, tk):
    k = pl.program_id(1)
    nk = pl.num_programs(1)

    @pl.when(k == 0)
    def _():
        gx_acc[...] = jnp.zeros_like(gx_acc)
        gy_acc[...] = jnp.zeros_like(gy_acc)

    xdk = xdk_ref[...]                                        # (tk, C) bf16
    if n_total % tk != 0:
        # mask padded reduction rows (only the last k block can be ragged)
        valid = n_total - k * tk
        rows = lax.broadcasted_iota(jnp.int32, xdk.shape, 0)
        xdk = jnp.where(rows < valid, xdk, jnp.zeros_like(xdk))

    gx_acc[...] += jnp.dot(gX_ref[...], xdk, preferred_element_type=jnp.float32)
    gy_acc[...] += jnp.dot(gY_ref[...], xdk, preferred_element_type=jnp.float32)

    @pl.when(k == nk - 1)
    def _():
        C = o_ref.shape[1]
        gx = gx_acc[...]                                      # (tm, C) f32
        gy = gy_acc[...]
        acat = acat_ref[...]                                  # (C, 2C) = [a_re|a_im]
        gx_rot = jnp.dot(gx.astype(jnp.bfloat16), acat,
                         preferred_element_type=jnp.float32)  # (tm, 2C)
        gy_rot = jnp.dot(gy.astype(jnp.bfloat16), acat,
                         preferred_element_type=jnp.float32)  # (tm, 2C)
        b_re = gx_rot[:, :C] - gy_rot[:, C:]
        b_im = gy_rot[:, :C] + gx_rot[:, C:]
        gfeat = jnp.tanh(gx * b_re + gy * b_im)               # (tm, C) f32

        x = x_ref[...]                                        # (tm, C) f32 (residual)
        cat = jnp.concatenate(
            [x.astype(jnp.bfloat16), xd_ref[...], gfeat.astype(jnp.bfloat16)],
            axis=1)                                           # (tm, 3C) bf16
        h = (jnp.dot(cat, w0_ref[...], preferred_element_type=jnp.float32)
             + b0_ref[...])
        h = jnp.maximum(h, 0.0)
        h = (jnp.dot(h.astype(jnp.bfloat16), w1_ref[...],
                     preferred_element_type=jnp.float32) + b1_ref[...])
        o_ref[...] = x + h                                    # residual


def fused_block_tail(x, x_diff_bf, gradX_bf, gradY_bf, blk, tm=256, tk=1024):
    N, C = x.shape
    tm_ = _fit_tile(N, tm)      # multiple of 8 (or the full dim)
    tk_ = _fit_tile(N, tk)      # multiple of 128 (or the full dim)
    row = lambda i, k: (i, 0)
    red = lambda i, k: (k, 0)
    band = lambda i, k: (i, k)
    full = lambda i, k: (0, 0)
    flops = 4 * N * N * C + 2 * N * C * (4 * C + 3 * C + C)
    bytes_acc = 4 * N * N + 16 * N * C + 2 * (2 * C * C + 3 * C * C + C * C)
    return pl.pallas_call(
        functools.partial(_block_tail_kernel, n_total=N, tk=tk_),
        out_shape=jax.ShapeDtypeStruct((N, C), jnp.float32),
        grid=(pl.cdiv(N, tm_), pl.cdiv(N, tk_)),
        in_specs=[
            pl.BlockSpec((tm_, C), row),       # x row tile          (f32)
            pl.BlockSpec((tm_, C), row),       # x_diff row tile     (bf16)
            pl.BlockSpec((tk_, C), red),       # x_diff reduction    (bf16)
            pl.BlockSpec((tm_, tk_), band),    # gradX band tile     (bf16)
            pl.BlockSpec((tm_, tk_), band),    # gradY band tile     (bf16)
            pl.BlockSpec((C, 2 * C), full),    # [a_re | a_im]
            pl.BlockSpec((3 * C, C), full),    # stacked mlp0 weight
            pl.BlockSpec((1, C), full),        # b0
            pl.BlockSpec((C, C), full),        # w1
            pl.BlockSpec((1, C), full),        # b1
        ],
        out_specs=pl.BlockSpec((tm_, C), row),
        scratch_shapes=[pltpu.VMEM((tm_, C), jnp.float32),
                        pltpu.VMEM((tm_, C), jnp.float32)],
        compiler_params=pltpu.CompilerParams(
            dimension_semantics=("parallel", "arbitrary"),
            vmem_limit_bytes=_vmem_limit_bytes()),
        cost_estimate=pl.CostEstimate(
            flops=flops, transcendentals=N * C, bytes_accessed=bytes_acc),
    )(x, x_diff_bf, x_diff_bf, gradX_bf, gradY_bf,
      blk["a_cat"], blk["w0"], blk["b0"].reshape(1, C),
      blk["w1"], blk["b1"].reshape(1, C))


# ---- Fused 4-layer refine MLP (D->D->512->256->12, lane-padded head) -------
def _refine_kernel(x_ref, w0_ref, b0_ref, w1_ref, b1_ref, w2_ref, b2_ref,
                   w3_ref, b3_ref, o_ref):
    h = x_ref[...].astype(jnp.bfloat16)
    h = jnp.maximum(
        jnp.dot(h, w0_ref[...], preferred_element_type=jnp.float32)
        + b0_ref[...], 0.0)
    h = jnp.maximum(
        jnp.dot(h.astype(jnp.bfloat16), w1_ref[...],
                preferred_element_type=jnp.float32) + b1_ref[...], 0.0)
    h = jnp.maximum(
        jnp.dot(h.astype(jnp.bfloat16), w2_ref[...],
                preferred_element_type=jnp.float32) + b2_ref[...], 0.0)
    h = (jnp.dot(h.astype(jnp.bfloat16), w3_ref[...],
                 preferred_element_type=jnp.float32) + b3_ref[...])
    o_ref[...] = h.astype(o_ref.dtype)       # lane-dense bf16 writeback


def fused_refine(x, refine_params, tm=256):
    F, D = x.shape
    (w0, b0), (w1, b1), (w2, b2), (w3, b3) = refine_params
    NP = w3.shape[1]                          # 128 (lane-dense padded head)
    tm_ = _fit_tile(F, tm)
    row = lambda i: (i, 0)
    full = lambda i: (0, 0)
    flops = 2 * F * (D * w0.shape[1] + w0.shape[1] * w1.shape[1]
                     + w1.shape[1] * w2.shape[1] + w2.shape[1] * NP)
    out = pl.pallas_call(
        _refine_kernel,
        out_shape=jax.ShapeDtypeStruct((F, NP), jnp.bfloat16),
        grid=(pl.cdiv(F, tm_),),
        in_specs=[
            pl.BlockSpec((tm_, D), row),
            pl.BlockSpec(w0.shape, full), pl.BlockSpec((1, w0.shape[1]), full),
            pl.BlockSpec(w1.shape, full), pl.BlockSpec((1, w1.shape[1]), full),
            pl.BlockSpec(w2.shape, full), pl.BlockSpec((1, w2.shape[1]), full),
            pl.BlockSpec(w3.shape, full), pl.BlockSpec((1, NP), full),
        ],
        out_specs=pl.BlockSpec((tm_, NP), row),
        compiler_params=pltpu.CompilerParams(
            dimension_semantics=("parallel",),
            vmem_limit_bytes=_vmem_limit_bytes()),
        cost_estimate=pl.CostEstimate(
            flops=flops, transcendentals=0,
            bytes_accessed=4 * F * D + 2 * F * NP),
    )(x, w0, b0.reshape(1, -1), w1, b1.reshape(1, -1),
      w2, b2.reshape(1, -1), w3, b3.reshape(1, -1))
    return out[:, :12].astype(jnp.float32)


# --------------------------------------------------------------------------
# Parameter initialization (deterministic, synthetic)
# --------------------------------------------------------------------------
def _init_linear(key, fan_in, fan_out):
    kw, kb = jax.random.split(key)
    w = (jax.random.normal(kw, (fan_in, fan_out), jnp.float32)
         / jnp.sqrt(fan_in)).astype(jnp.bfloat16)       # bf16 weights (MXU)
    b = jax.random.normal(kb, (fan_out,), jnp.float32) * 0.01
    return w, b


def init_prism_decoder_params(key, dim_in, dim_out, n_width, n_block):
    keys = jax.random.split(key, 3 + n_block)
    dn = {"first": _init_linear(keys[0], dim_in, n_width),
          "last": _init_linear(keys[1], n_width, dim_out),
          "blocks": []}
    for b in range(n_block):
        bk = jax.random.split(keys[3 + b], 6)
        a_re = (jax.random.normal(bk[0], (n_width, n_width), jnp.float32)
                / jnp.sqrt(n_width)).astype(jnp.bfloat16)
        a_im = (jax.random.normal(bk[1], (n_width, n_width), jnp.float32)
                / jnp.sqrt(n_width)).astype(jnp.bfloat16)
        # mlp0 (3*n_width -> n_width) stored pre-stacked along the concat axis
        w0x, b0 = _init_linear(bk[2], n_width, n_width)
        w0d, _ = _init_linear(bk[3], n_width, n_width)
        w0g, _ = _init_linear(bk[4], n_width, n_width)
        w1, b1 = _init_linear(bk[5], n_width, n_width)
        blk = {
            "time": jnp.linspace(0.01, 0.2, n_width, dtype=jnp.float32),
            "a_cat": jnp.concatenate([a_re, a_im], axis=1),        # (C, 2C)
            "w0": jnp.concatenate([w0x, w0d, w0g], axis=0),        # (3C, C)
            "b0": b0, "w1": w1, "b1": b1,
        }
        dn["blocks"].append(blk)
    params = {"diffusion_net": dn}

    rk = jax.random.split(keys[2], 4)
    r0 = _init_linear(rk[0], dim_out, dim_out)
    r1 = _init_linear(rk[1], dim_out, 512)
    r2 = _init_linear(rk[2], 512, 256)
    w3, b3 = _init_linear(rk[3], 256, 12)
    # pad the 12-wide head to a lane-dense 128-channel output (zero columns)
    w3 = jnp.pad(w3, ((0, 0), (0, 128 - 12)))
    b3 = jnp.pad(b3, (0, 128 - 12))
    params["refine"] = [r0, r1, r2, (w3, b3)]
    return params


# --------------------------------------------------------------------------
# Forward pass
# --------------------------------------------------------------------------
def diffusion_net_forward(params, x, mass, evals, evecs, gradX, gradY):
    # cast reused (largest) operators to bf16 once per forward, not per block
    evecs_bf = evecs.astype(jnp.bfloat16)
    # TODO(synk): gradX/gradY are dense here (DiffusionNet uses sparse
    # operators); dense matmul matches numerics but is O(N^2) for real meshes.
    gradX_bf = gradX.astype(jnp.bfloat16)
    gradY_bf = gradY.astype(jnp.bfloat16)

    x = pallas_linear(x, *params["first"])
    for blk in params["blocks"]:
        # hoisted grid-invariant diffusion coefficient (tiny (K,C))
        coef = jnp.exp(-evals[:, None] * blk["time"][None, :])
        x_diff = spectral_diffusion(x, mass, evecs_bf, coef)
        x = fused_block_tail(x, x_diff.astype(jnp.bfloat16),
                             gradX_bf, gradY_bf, blk)
    return pallas_linear(x, *params["last"])


def special_procrustes(m):
    # TODO(synk): roma.special_procrustes uses SVD; no clean Pallas SVD —
    # done with jnp.linalg.svd (plain JAX) on batched 3x3 matrices.
    u, s, vh = jnp.linalg.svd(m)
    det = jnp.linalg.det(jnp.einsum("...ij,...jk->...ik", u, vh))
    d = jnp.stack([jnp.ones_like(det), jnp.ones_like(det), det], axis=-1)
    return jnp.einsum("...ij,...jk->...ik", u * d[..., None, :], vh)


def prism_to_vertices(prism, faces, verts):
    # scatter-add of per-face prisms back onto vertices, then mean by count.
    n = verts.shape[0]
    d = prism.shape[-1]
    idx = faces.reshape(-1)
    feats = jnp.zeros((n, d), jnp.float32).at[idx].add(prism.reshape(-1, d))
    counts = jnp.zeros((n,), jnp.float32).at[idx].add(1.0)
    return feats / jnp.maximum(counts, 1.0)[:, None]


def prism_decoder_forward(params, batch_dict, latent):
    verts = batch_dict["vertices"]          # (N, 3)
    faces = batch_dict["faces"]             # (F, 3) int32
    prism_base = verts[faces]               # (F, 3, 3)
    bs = 1

    features = diffusion_net_forward(
        params["diffusion_net"], latent,
        batch_dict["mass"], batch_dict["evals"], batch_dict["evecs"],
        batch_dict["gradX"], batch_dict["gradY"])        # (N, dim_out)

    # torch.gather over faces + mean over the 3 face vertices (glue in JAX)
    feat_face = jnp.mean(features[faces], axis=1)        # (F, dim_out)

    h = fused_refine(feat_face, params["refine"])        # (F, 12)

    rotations = special_procrustes(h[:, :9].reshape(-1, 3, 3))    # (F,3,3)
    translations = h[:, 9:12].reshape(-1, 3)                       # (F,3)

    transformed_prism = (jnp.einsum("fij,fjk->fik", prism_base, rotations)
                         + translations[:, None, :])               # (F,3,3)

    feats_v = prism_to_vertices(transformed_prism, faces, verts)   # (N,3)
    out_features = feats_v.reshape(bs, -1, 3)
    return out_features, transformed_prism, rotations


# --------------------------------------------------------------------------
# Demo
# --------------------------------------------------------------------------
if __name__ == "__main__":
    # small, DiffusionNet-consistent shapes; channel width padded to 128 so
    # every kernel output is lane-dense (perf review).
    DIM_IN, DIM_OUT, N_WIDTH, N_BLOCK, NEIG = 128, 128, 128, 2, 64
    N_VERTS, N_FACES = 48, 64

    key = jax.random.PRNGKey(0)
    (k_param, k_lat, k_vert, k_face, k_mass, k_evec,
     k_gx, k_gy, k_l) = jax.random.split(key, 9)

    params = init_prism_decoder_params(k_param, DIM_IN, DIM_OUT,
                                       N_WIDTH, N_BLOCK)

    latent = jax.random.normal(k_lat, (N_VERTS, DIM_IN), jnp.float32)
    batch_dict = {
        "vertices": jax.random.normal(k_vert, (N_VERTS, 3), jnp.float32),
        "faces": jax.random.randint(k_face, (N_FACES, 3), 0, N_VERTS,
                                    dtype=jnp.int32),
        "mass": jax.random.uniform(k_mass, (N_VERTS,), jnp.float32,
                                   0.5, 1.5),
        "L": jax.random.normal(k_l, (N_VERTS, N_VERTS), jnp.float32) * 0.1,
        "evals": jnp.linspace(0.0, 5.0, NEIG, dtype=jnp.float32),
        "evecs": jax.random.normal(k_evec, (N_VERTS, NEIG), jnp.float32)
                 / jnp.sqrt(N_VERTS),
        "gradX": jax.random.normal(k_gx, (N_VERTS, N_VERTS), jnp.float32)
                 * 0.1,
        "gradY": jax.random.normal(k_gy, (N_VERTS, N_VERTS), jnp.float32)
                 * 0.1,
    }

    out_features, transformed_prism, rotations = prism_decoder_forward(
        params, batch_dict, latent)
    jax.block_until_ready((out_features, transformed_prism, rotations))

    assert out_features.shape == (1, N_VERTS, 3)
    assert transformed_prism.shape == (N_FACES, 3, 3)
    assert rotations.shape == (N_FACES, 3, 3)
    assert jnp.all(jnp.isfinite(out_features))
    assert jnp.all(jnp.isfinite(transformed_prism))
    print("KERNEL_OK")
</pallas_src>

<mosaic_0001>
module attributes {stable_mosaic.version = 11 : i64} {
  func.func @_linear_kernel(%arg0: i32, %arg1: memref<48x128xf32, #tpu.memory_space<vmem>>, %arg2: memref<128x128xbf16, #tpu.memory_space<vmem>>, %arg3: memref<1x128xf32, #tpu.memory_space<vmem>>, %arg4: memref<48x128xf32, #tpu.memory_space<vmem>>) attributes {dimension_semantics = [#tpu.dimension_semantics<parallel>], iteration_bounds = array<i64: 1>, scalar_prefetch = 0 : i64, scratch_operands = 0 : i64, tpu.core_type = #tpu.core_type<tc>, window_params = [{transform_indices = @transform_0, window_bounds = array<i64: 48, 128>}, {pipeline_mode = #tpu.pipeline_mode<synchronous>, transform_indices = @transform_1, window_bounds = array<i64: 128, 128>}, {pipeline_mode = #tpu.pipeline_mode<synchronous>, transform_indices = @transform_2, window_bounds = array<i64: 1, 128>}, {transform_indices = @transform_3, window_bounds = array<i64: 48, 128>}]} {
    %c0 = arith.constant 0 : index
    %c0_0 = arith.constant 0 : index
    %0 = vector.load %arg1[%c0, %c0_0] : memref<48x128xf32, #tpu.memory_space<vmem>>, vector<48x128xf32>
    %1 = arith.truncf %0 : vector<48x128xf32> to vector<48x128xbf16>
    %c0_1 = arith.constant 0 : index
    %c0_2 = arith.constant 0 : index
    %2 = vector.load %arg2[%c0_1, %c0_2] : memref<128x128xbf16, #tpu.memory_space<vmem>>, vector<128x128xbf16>
    %cst = arith.constant dense<0.000000e+00> : vector<48x128xf32>
    %3 = tpu.matmul %1, %2, %cst {dimension_numbers = #tpu.dot_dimension_numbers<[1], [0], [0], [1], [0, 0, 1, 1], [], []>} : vector<48x128xbf16>, vector<128x128xbf16>, vector<48x128xf32> -> vector<48x128xf32>
    %c0_3 = arith.constant 0 : index
    %c0_4 = arith.constant 0 : index
    %4 = vector.load %arg3[%c0_3, %c0_4] : memref<1x128xf32, #tpu.memory_space<vmem>>, vector<1x128xf32>
    %5 = vector.broadcast %4 : vector<1x128xf32> to vector<48x128xf32>
    %6 = arith.addf %3, %5 : vector<48x128xf32>
    %c0_5 = arith.constant 0 : index
    %c0_6 = arith.constant 0 : index
    %7 = vector.load %arg4[%c0_5, %c0_6] : memref<48x128xf32, #tpu.memory_space<vmem>>, vector<48x128xf32>
    tpu.vector_store %arg4[%c0_5, %c0_6], %6 {strides = array<i32>} : memref<48x128xf32, #tpu.memory_space<vmem>>, vector<48x128xf32>,
    return
  }
  func.func @transform_0(%arg0: i32) -> (i32, i32) {
    %c0_i32 = arith.constant 0 : i32
    %c0_i32_0 = arith.constant 0 : i32
    return %arg0, %c0_i32 : i32, i32
  }
  func.func @transform_1(%arg0: i32) -> (i32, i32) {
    %c0_i32 = arith.constant 0 : i32
    %c0_i32_0 = arith.constant 0 : i32
    %c0_i32_1 = arith.constant 0 : i32
    return %c0_i32, %c0_i32_0 : i32, i32
  }
  func.func @transform_2(%arg0: i32) -> (i32, i32) {
    %c0_i32 = arith.constant 0 : i32
    %c0_i32_0 = arith.constant 0 : i32
    %c0_i32_1 = arith.constant 0 : i32
    return %c0_i32, %c0_i32_0 : i32, i32
  }
  func.func @transform_3(%arg0: i32) -> (i32, i32) {
    %c0_i32 = arith.constant 0 : i32
    %c0_i32_0 = arith.constant 0 : i32
    return %arg0, %c0_i32 : i32, i32
  }
}

</mosaic_0001>

<llo_original>
// kernel: tpu_custom_call.1
$region0: #{tpu_custom_call.1}
  #allocation0 [shape = 'u32[]', space=smem, size = 0x4, offset = 0x4, fixed_abs, tag = 'smem constant byte address 0x4 - core index']
  #allocation1 [shape = 'u32[144,128]{1,0:T(1,128)}', space=vmem, size = 0x12000, scoped, tag = 'internal scratch']
  %s0 = inlined_call_operand.hbm [shape: f32[48,128], index: 0, kind: input, shape index: {}]
  %s1 = inlined_call_operand.hbm [shape: bf16[128,128], index: 1, kind: input, shape index: {}]
  %s2 = inlined_call_operand.vmem [shape: f32[1,128], index: 2, kind: input, shape index: {}]
  %s3 = inlined_call_operand.hbm [shape: f32[48,128], index: 3, kind: output, shape index: {}]
  %s4 = sld [smem:[#allocation0]]
  $region30: #{tpu_custom_call.1} parent=0
    _
  %s6 = ssub.s32 1, %s4
  %s7 = scalar_select 0, %s6, %s4
  $region1: #{tpu_custom_call.1} parent=0
    #allocation2 [shape = 'u8[24576]{0}', space=vmem, size = 0x6000, scoped, tag = 'input window, operand 0, single buffered']
    #allocation3 [shape = 's32[1]{0}', space=sflag, size = 0x4, scoped, tag = 'scoped memory for tpu_custom_call.1']
    #allocation4 [shape = 's32[1]{0}', space=sflag, size = 0x4, scoped, tag = 'scoped memory for tpu_custom_call.1']
    #allocation5 [shape = 'u8[32768]{0}', space=vmem, size = 0x8000, scoped, tag = 'input window, operand 1, single buffered']
    #allocation6 [shape = 's32[1]{0}', space=sflag, size = 0x4, scoped, tag = 'scoped memory for tpu_custom_call.1']
    #allocation7 [shape = 'u8[24576]{0}', space=vmem, size = 0x6000, scoped, tag = 'output window, operand 0, single buffered']
    %8 = vsyncpa [#allocation3], 0
    %9 = vsyncpa [#allocation6], 0
    %10 = vsyncpa [#allocation4], 0
    // Predicated region
    $region2: #{tpu_custom_call.1} parent=1 // pred_check
      _
    $region3: #{tpu_custom_call.1} parent=1 // pred_check_branch
      %12 = sbr.rel (0) target = $region5
    $region4: #{tpu_custom_call.1} parent=1 // pred_region
      %s14 = ssub.s32 768, 768
      %15 = vsyncadd [#allocation3], %s14
      %s16 = sshll.u32 [#allocation2], 4
      %s17 = int_to_ptr.vmem [resolvable:$true] %s16
      %22 = dma.hbm_to_vmem [thread:$0]  %s0, 768, %s17, [#allocation3], 128, 128, 8
    $region5: #{tpu_custom_call.1} parent=1 // pred_fallthru
      _
    // Predicated region
    $region6: #{tpu_custom_call.1} parent=1 // pred_check
      _
    $region7: #{tpu_custom_call.1} parent=1 // pred_check_branch
      %24 = sbr.rel (0) target = $region9
    $region8: #{tpu_custom_call.1} parent=1 // pred_region
      %s26 = ssub.s32 1024, 1024
      %27 = vsyncadd [#allocation6], %s26
      %s28 = sshll.u32 [#allocation5], 4
      %s29 = int_to_ptr.vmem [resolvable:$true] %s28
      %34 = dma.hbm_to_vmem [thread:$0]  %s1, 1024, %s29, [#allocation6], 64, 64, 4
    $region9: #{tpu_custom_call.1} parent=1 // pred_fallthru
      _
    // Predicated region
    $region10: #{tpu_custom_call.1} parent=1 // pred_check
      _
    $region11: #{tpu_custom_call.1} parent=1 // pred_check_branch
      %36 = sbr.rel (0) target = $region13
    $region12: #{tpu_custom_call.1} parent=1 // pred_region
      _
    $region13: #{tpu_custom_call.1} parent=1 // pred_fallthru
      _
    // Predicated region
    $region14: #{tpu_custom_call.1} parent=1 // pred_check
      _
    $region15: #{tpu_custom_call.1} parent=1 // pred_check_branch
      %38 = sbr.rel (0) target = $region17
    $region16: #{tpu_custom_call.1} parent=1 // pred_region
      %39 = dma.done [#allocation3], 768
    $region17: #{tpu_custom_call.1} parent=1 // pred_fallthru
      _
    // Predicated region
    $region18: #{tpu_custom_call.1} parent=1 // pred_check
      _
    $region19: #{tpu_custom_call.1} parent=1 // pred_check_branch
      %41 = sbr.rel (0) target = $region21
    $region20: #{tpu_custom_call.1} parent=1 // pred_region
      %42 = dma.done [#allocation6], 1024
    $region21: #{tpu_custom_call.1} parent=1 // pred_fallthru
      _
    %v44 = vld [vmem:[#allocation2] sm:$0xff]
    %v45 = vld [vmem:[#allocation2 + $0x8] sm:$0xff]
    %v46 = vld [vmem:[#allocation2 + $0x10] sm:$0xff]
    %v47 = vld [vmem:[#allocation2 + $0x18] sm:$0xff]
    %v48 = vld [vmem:[#allocation2 + $0x20] sm:$0xff]
    %v49 = vld [vmem:[#allocation2 + $0x28] sm:$0xff]
    %v50 = vpack.c.bf16 %v45, %v44
    %v51 = vpack.c.bf16 %v47, %v46
    %v52 = vpack.c.bf16 %v49, %v48
    %v53 = vld [vmem:[#allocation5] sm:$0xf]
    %v54 = vld [vmem:[#allocation5 + $0x4] sm:$0xf]
    %v55 = vld [vmem:[#allocation5 + $0x8] sm:$0xf]
    %v56 = vld [vmem:[#allocation5 + $0xc] sm:$0xf]
    %v57 = vld [vmem:[#allocation5 + $0x10] sm:$0xf]
    %v58 = vld [vmem:[#allocation5 + $0x14] sm:$0xf]
    %v59 = vld [vmem:[#allocation5 + $0x18] sm:$0xf]
    %v60 = vld [vmem:[#allocation5 + $0x1c] sm:$0xf]
    %v61 = vld [vmem:[#allocation5 + $0x20] sm:$0xf]
    %v62 = vld [vmem:[#allocation5 + $0x24] sm:$0xf]
    %v63 = vld [vmem:[#allocation5 + $0x28] sm:$0xf]
    %v64 = vld [vmem:[#allocation5 + $0x2c] sm:$0xf]
    %v65 = vld [vmem:[#allocation5 + $0x30] sm:$0xf]
    %v66 = vld [vmem:[#allocation5 + $0x34] sm:$0xf]
    %v67 = vld [vmem:[#allocation5 + $0x38] sm:$0xf]
    %v68 = vld [vmem:[#allocation5 + $0x3c] sm:$0xf]
    %v69 = vld [vmem:[%s2] sm:$0x1]
    %v71 = vlaneseq
    %v72 = vshrl.u32 %v71, 7
    %v73 = vsub.s32 0, %v72
    %v74 = vrot.slane %v69, %v73
    %v92 = vunpack.c.l.b16 %v53
    %v93 = vunpack.c.l.b16 %v54
    %v94 = vunpack.c.l.b16 %v55
    %v95 = vunpack.c.l.b16 %v56
    %v96 = vunpack.c.l.b16 %v57
    %v97 = vunpack.c.l.b16 %v58
    %v98 = vunpack.c.l.b16 %v59
    %v99 = vunpack.c.l.b16 %v60
    %v100 = vunpack.c.l.b16 %v61
    %v101 = vunpack.c.l.b16 %v62
    %v102 = vunpack.c.l.b16 %v63
    %v103 = vunpack.c.l.b16 %v64
    %v104 = vunpack.c.l.b16 %v65
    %v105 = vunpack.c.l.b16 %v66
    %v106 = vunpack.c.l.b16 %v67
    %v107 = vunpack.c.l.b16 %v68
    %v108 = vpack.c.b16 %v93, %v92
    %v109 = vpack.c.b16 %v95, %v94
    %v110 = vpack.c.b16 %v97, %v96
    %v111 = vpack.c.b16 %v99, %v98
    %v112 = vpack.c.b16 %v101, %v100
    %v113 = vpack.c.b16 %v103, %v102
    %v114 = vpack.c.b16 %v105, %v104
    %v115 = vpack.c.b16 %v107, %v106
    %124 = vmatprep.subr.bf16.mxu0 0
    %125 = vmatpush1.bf16.msra.mxu0 %v108
    %126 = vmatprep.subr.bf16.mxu0 0
    %127 = vmatpush1.bf16.msra.mxu0 %v109
    %128 = vmatprep.subr.bf16.mxu0 0
    %129 = vmatpush1.bf16.msra.mxu0 %v110
    %130 = vmatprep.subr.bf16.mxu0 0
    %131 = vmatpush1.bf16.msra.mxu0 %v111
    %132 = vmatprep.subr.bf16.mxu0 0
    %133 = vmatpush1.bf16.msra.mxu0 %v112
    %134 = vmatprep.subr.bf16.mxu0 0
    %135 = vmatpush1.bf16.msra.mxu0 %v113
    %136 = vmatprep.subr.bf16.mxu0 0
    %137 = vmatpush1.bf16.msra.mxu0 %v114
    %138 = vmatprep.subr.bf16.mxu0 0
    %139 = vmatpush1.bf16.msra.mxu0 %v115
    %140 = vmatprep.subr.bf16.mxu0 0
    %141 = vmatpush1.bf16.msra.mxu0 0
    %142 = vmatprep.subr.bf16.mxu0 0
    %143 = vmatpush1.bf16.msra.mxu0 0
    %144 = vmatprep.subr.bf16.mxu0 0
    %145 = vmatpush1.bf16.msra.mxu0 0
    %146 = vmatprep.subr.bf16.mxu0 0
    %147 = vmatpush1.bf16.msra.mxu0 0
    %148 = vmatprep.subr.bf16.mxu0 0
    %149 = vmatpush1.bf16.msra.mxu0 0
    %150 = vmatprep.subr.bf16.mxu0 0
    %151 = vmatpush1.bf16.msra.mxu0 0
    %152 = vmatprep.subr.bf16.mxu0 0
    %153 = vmatpush1.bf16.msra.mxu0 0
    %154 = vmatprep.subr.bf16.mxu0 0
    %155 = vmatpush1.bf16.msra.mxu0 0
    %156 = vmatprep.mubr.bf16.mxu0 0
    %157 = vmatmul.mubr.bf16.gmra.mrb[0].mxu0 %v50
    %v158 = vpop.f32.mrb[0].mxu0
    %v159 = vadd.f32 %v74, %v158
    %v160 = vpop.f32.mrb[0].mxu0
    %v161 = vpop.f32.mrb[0].mxu0
    %v162 = vadd.f32 %v74, %v161
    %v163 = vpop.f32.mrb[0].mxu0
    %164 = vmatprep.mubr.bf16.mxu0 0
    %165 = vmatmul.mubr.bf16.gmra.mrb[0].mxu0 %v51
    %v166 = vpop.f32.mrb[0].mxu0
    %v167 = vadd.f32 %v74, %v166
    %v168 = vpop.f32.mrb[0].mxu0
    %v169 = vpop.f32.mrb[0].mxu0
    %v170 = vadd.f32 %v74, %v169
    %v171 = vpop.f32.mrb[0].mxu0
    %172 = vmatprep.mubr.bf16.mxu0 0
    %173 = vmatmul.mubr.bf16.gmra.mrb[0].mxu0 %v52
    %v174 = vpop.f32.mrb[0].mxu0
    %v175 = vadd.f32 %v74, %v174
    %v176 = vpop.f32.mrb[0].mxu0
    %v177 = vpop.f32.mrb[0].mxu0
    %v178 = vadd.f32 %v74, %v177
    %v179 = vpop.f32.mrb[0].mxu0
    %180 = vdwg.mxu0
    %181 = vst [vmem:[#allocation7] sm:$0xff] %v159
    %182 = vst [vmem:[#allocation7 + $0x8] sm:$0xff] %v162
    %183 = vst [vmem:[#allocation7 + $0x10] sm:$0xff] %v167
    %184 = vst [vmem:[#allocation7 + $0x18] sm:$0xff] %v170
    %185 = vst [vmem:[#allocation7 + $0x20] sm:$0xff] %v175
    %186 = vst [vmem:[#allocation7 + $0x28] sm:$0xff] %v178
    // Predicated region
    $region22: #{tpu_custom_call.1} parent=1 // pred_check
      _
    $region23: #{tpu_custom_call.1} parent=1 // pred_check_branch
      %188 = sbr.rel (0) target = $region25
    $region24: #{tpu_custom_call.1} parent=1 // pred_region
      %s190 = ssub.s32 768, 768
      %191 = vsyncadd [#allocation4], %s190
      %s192 = sshll.u32 [#allocation7], 4
      %s193 = int_to_ptr.vmem [resolvable:$true] %s192
      %198 = dma.vmem_to_hbm [thread:$0]  %s193, 768, %s3, [#allocation4], 128, 128, 8
    $region25: #{tpu_custom_call.1} parent=1 // pred_fallthru
      _
    // Predicated region
    $region26: #{tpu_custom_call.1} parent=1 // pred_check
      _
    $region27: #{tpu_custom_call.1} parent=1 // pred_check_branch
      %200 = sbr.rel (0) target = $region29
    $region28: #{tpu_custom_call.1} parent=1 // pred_region
      %201 = dma.done [#allocation4], 768
    $region29: #{tpu_custom_call.1} parent=1 // pred_fallthru
      _
    %202 = vsyncpa [#allocation3], 1
    %203 = vsyncpa [#allocation6], 1
    %204 = vsyncpa [#allocation4], 1

</llo_original>
